<compile_context>
chip_gen: v7x
topology: tpu7x:2x2x1
jax: 0.10.0
libtpu: 0.0.40
codegen_flags: <defaults>
</compile_context>

<pallas_src>
import functools

import jax
import jax.numpy as jnp
from jax.experimental import pallas as pl
from jax.experimental.pallas import tpu as pltpu

HIDDEN = 128  # hidden width of both heads (fixed by the PyTorch module)


def ppo_fused_kernel(x_ref, w1_ref, b1_ref, w2a_ref, b2_ref, wc2_ref, out_ref,
                     *, output_dim, compute_dtype):
    """One lane-dense (TILE_B, out_pad) slab:
         lanes [0:output_dim]         -> actor logits
         lane  output_dim             -> critic value
         lanes (output_dim:out_pad)   -> zero padding
    """
    x = x_ref[...]  # already in compute_dtype (cast upstream in the wrapper)

    # Fused layer 1: both heads' first Linear in one (input_dim, 256) matmul,
    # f32 accumulation, bias + ReLU in f32.
    h = jnp.dot(x, w1_ref[...], preferred_element_type=jnp.float32) + b1_ref[...]
    h = jnp.maximum(h, 0.0)                      # (TILE_B, 2*HIDDEN) f32

    h_a = h[:, :HIDDEN].astype(compute_dtype)    # actor branch -> MXU
    h_c = h[:, HIDDEN:]                          # critic branch stays f32

    # Actor layer 2: dense (TILE_B,128)@(128,out_pad) MXU dot (padded cols are
    # zero weights).  b2 already carries the critic bias at lane `output_dim`.
    actor = jnp.dot(h_a, w2a_ref[...], preferred_element_type=jnp.float32) + b2_ref[...]

    # Critic layer 2: f32 VPU multiply + XLU lane reduce (no MXU, no precision
    # loss in bf16 mode), folded into lane `output_dim` of the slab.
    critic = jnp.sum(h_c * wc2_ref[...], axis=-1, keepdims=True)  # (TILE_B, 1)

    lane = jax.lax.broadcasted_iota(jnp.int32, actor.shape, 1)
    out = jnp.where(lane == output_dim, actor + critic, actor)

    out_ref[...] = out.astype(out_ref.dtype)


def init_ppo_params(key, input_dim, output_dim, hidden=HIDDEN):
    """Deterministic synthetic params, PyTorch Linear layout (out_features, in_features)."""
    ks = jax.random.split(key, 8)

    def lin(kw, kb, out_f, in_f):
        bound = 1.0 / jnp.sqrt(in_f)
        w = jax.random.uniform(kw, (out_f, in_f), jnp.float32, -bound, bound)
        b = jax.random.uniform(kb, (out_f,), jnp.float32, -bound, bound)
        return w, b

    wa1, ba1 = lin(ks[0], ks[1], hidden, input_dim)
    wa2, ba2 = lin(ks[2], ks[3], output_dim, hidden)
    wc1, bc1 = lin(ks[4], ks[5], hidden, input_dim)
    wc2, bc2 = lin(ks[6], ks[7], 1, hidden)
    return dict(wa1=wa1, ba1=ba1, wa2=wa2, ba2=ba2,
                wc1=wc1, bc1=bc1, wc2=wc2, bc2=bc2)


def pack_ppo_params(params, output_dim, compute_dtype=jnp.float32):
    """One-time packing: transpose to (in, out), fuse the two first layers,
    pad the actor second layer to a lane-dense slab, keep biases / critic row f32."""
    H = HIDDEN
    out_pad = max(128, pl.cdiv(output_dim + 1, 128) * 128)  # actor lanes + 1 critic lane

    # Layer 1: (input_dim, 2H) fused weight, (1, 2H) fused f32 bias.
    w1 = jnp.concatenate([params["wa1"].T, params["wc1"].T], axis=1).astype(compute_dtype)
    b1 = jnp.concatenate([params["ba1"], params["bc1"]]).reshape(1, 2 * H).astype(jnp.float32)

    # Actor layer 2: (H, out_pad) zero-padded weight (MXU operand dtype).
    w2a = jnp.zeros((H, out_pad), jnp.float32).at[:, :output_dim].set(params["wa2"].T)
    w2a = w2a.astype(compute_dtype)

    # Fused second-layer bias: actor biases + critic bias at lane `output_dim` (f32).
    b2 = jnp.zeros((1, out_pad), jnp.float32)
    b2 = b2.at[0, :output_dim].set(params["ba2"])
    b2 = b2.at[0, output_dim].set(params["bc2"][0])

    # Critic layer 2 weight row, kept in f32 for a precise VPU reduction.
    wc2 = params["wc2"].reshape(1, H).astype(jnp.float32)

    return dict(w1=w1, b1=b1, w2a=w2a, b2=b2, wc2=wc2,
                output_dim=output_dim, out_pad=out_pad, compute_dtype=compute_dtype)


def _pick_tile(batch, input_dim, out_pad, x_itemsize, out_itemsize, tile_b_max):
    """Balanced batch tile: big enough to amortize ~0.35 us/grid-step overhead,
    small enough for every generation's default scoped-VMEM limit, aligned to the
    sublane packing of the narrowest dtype, and with minimal batch padding."""
    sub = 16 if min(x_itemsize, out_itemsize) < 4 else 8

    # Rough per-row VMEM: double-buffered x + double-buffered out + f32 h + f32 actor/out temps.
    bytes_per_row = (2 * input_dim * x_itemsize + 2 * out_pad * out_itemsize
                     + 4 * (2 * HIDDEN) + 2 * 4 * out_pad)
    budget = 12 * 1024 * 1024                      # < v5e's 16 MiB default scoped VMEM
    cap = min(tile_b_max, max(sub, budget // bytes_per_row))
    cap = max(sub, (cap // sub) * sub)

    n_tiles = pl.cdiv(batch, cap)
    if n_tiles == 1 and batch >= 2 * sub:
        n_tiles = 2                                # v7x: give both TensorCores a step
    tile_b = pl.cdiv(pl.cdiv(batch, n_tiles), sub) * sub
    n_tiles = pl.cdiv(batch, tile_b)
    return tile_b, n_tiles


def ppo_forward(x, packed, tile_b_max=4096, out_dtype=None):
    """Returns (actor_out [B, output_dim], critic_out [B, 1]) in float32."""
    B, input_dim = x.shape
    out_pad = packed["out_pad"]
    output_dim = packed["output_dim"]
    compute_dtype = packed["compute_dtype"]
    if out_dtype is None:
        # bf16 writeback halves the dominant HBM stream when operands are bf16.
        out_dtype = jnp.bfloat16 if compute_dtype == jnp.bfloat16 else jnp.float32

    # Cast x upstream of the pallas_call so the HBM->VMEM DMA itself is narrow.
    x = x.astype(compute_dtype)

    tile_b, n_tiles = _pick_tile(
        B, input_dim, out_pad,
        jnp.dtype(compute_dtype).itemsize, jnp.dtype(out_dtype).itemsize,
        tile_b_max)
    b_pad = n_tiles * tile_b
    if b_pad != B:
        x = jnp.pad(x, ((0, b_pad - B), (0, 0)))

    kernel = functools.partial(ppo_fused_kernel,
                               output_dim=output_dim, compute_dtype=compute_dtype)

    out = pl.pallas_call(
        kernel,
        out_shape=jax.ShapeDtypeStruct((b_pad, out_pad), out_dtype),
        grid_spec=pltpu.PrefetchScalarGridSpec(
            num_scalar_prefetch=0,
            grid=(n_tiles,),
            in_specs=[
                pl.BlockSpec((tile_b, input_dim), lambda i: (i, 0)),       # x tile (pipelined)
                pl.BlockSpec((input_dim, 2 * HIDDEN), lambda i: (0, 0)),   # W1 fused (resident)
                pl.BlockSpec((1, 2 * HIDDEN), lambda i: (0, 0)),           # b1 fused (resident)
                pl.BlockSpec((HIDDEN, out_pad), lambda i: (0, 0)),         # actor W2 (resident)
                pl.BlockSpec((1, out_pad), lambda i: (0, 0)),              # b2 fused (resident)
                pl.BlockSpec((1, HIDDEN), lambda i: (0, 0)),               # critic w2 row (resident)
            ],
            out_specs=pl.BlockSpec((tile_b, out_pad), lambda i: (i, 0)),   # lane-dense slab
        ),
        compiler_params=pltpu.CompilerParams(
            # NOTE: on v7x, pltpu.CORE_PARALLEL on this axis shards across the
            # two TensorCores; "parallel" is kept for portability.
            dimension_semantics=("parallel",),
        ),
    )(x, packed["w1"], packed["b1"], packed["w2a"], packed["b2"], packed["wc2"])

    # NOTE: downstream consumers (softmax / PPO loss) should ideally consume the
    # padded slab directly (mask lanes >= output_dim) to avoid re-reading it.
    actor_out = out[:B, :output_dim].astype(jnp.float32)
    critic_out = out[:B, output_dim:output_dim + 1].astype(jnp.float32)
    return actor_out, critic_out


if __name__ == "__main__":
    key = jax.random.PRNGKey(0)
    k_params, k_x = jax.random.split(key)

    batch, input_dim, output_dim = 8, 32, 8
    params = init_ppo_params(k_params, input_dim, output_dim)
    x = jax.random.normal(k_x, (batch, input_dim), jnp.float32)

    # Plain-JAX reference of the same forward pass.
    ha = jnp.maximum(x @ params["wa1"].T + params["ba1"], 0.0)
    ref_actor = ha @ params["wa2"].T + params["ba2"]
    hc = jnp.maximum(x @ params["wc1"].T + params["bc1"], 0.0)
    ref_critic = hc @ params["wc2"].T + params["bc2"]

    # --- f32 operand / f32 output path: exact correctness check -------------
    packed_f32 = pack_ppo_params(params, output_dim, compute_dtype=jnp.float32)
    actor_out, critic_out = ppo_forward(x, packed_f32)
    jax.block_until_ready((actor_out, critic_out))

    assert actor_out.shape == (batch, output_dim)
    assert critic_out.shape == (batch, 1)
    assert jnp.allclose(actor_out, ref_actor, atol=1e-4, rtol=1e-4)
    assert jnp.allclose(critic_out, ref_critic, atol=1e-4, rtol=1e-4)

    # --- bf16 operand / bf16 output path (throughput default for large B) ---
    packed_bf16 = pack_ppo_params(params, output_dim, compute_dtype=jnp.bfloat16)
    actor_bf, critic_bf = ppo_forward(x, packed_bf16)
    jax.block_until_ready((actor_bf, critic_bf))

    assert actor_bf.shape == (batch, output_dim)
    assert critic_bf.shape == (batch, 1)
    assert jnp.allclose(actor_bf, ref_actor, atol=5e-2, rtol=5e-2)
    assert jnp.allclose(critic_bf, ref_critic, atol=5e-2, rtol=5e-2)

    print("KERNEL_OK")
</pallas_src>

<mosaic_0001>
module attributes {stable_mosaic.version = 11 : i64} {
  func.func @ppo_fused_kernel(%arg0: i32, %arg1: memref<8x32xf32, #tpu.memory_space<vmem>>, %arg2: memref<32x256xf32, #tpu.memory_space<vmem>>, %arg3: memref<1x256xf32, #tpu.memory_space<vmem>>, %arg4: memref<128x128xf32, #tpu.memory_space<vmem>>, %arg5: memref<1x128xf32, #tpu.memory_space<vmem>>, %arg6: memref<1x128xf32, #tpu.memory_space<vmem>>, %arg7: memref<8x128xf32, #tpu.memory_space<vmem>>) attributes {dimension_semantics = [#tpu.dimension_semantics<parallel>], iteration_bounds = array<i64: 1>, scalar_prefetch = 0 : i64, scratch_operands = 0 : i64, tpu.core_type = #tpu.core_type<tc>, window_params = [{transform_indices = @transform_0, window_bounds = array<i64: 8, 32>}, {pipeline_mode = #tpu.pipeline_mode<synchronous>, transform_indices = @transform_1, window_bounds = array<i64: 32, 256>}, {pipeline_mode = #tpu.pipeline_mode<synchronous>, transform_indices = @transform_2, window_bounds = array<i64: 1, 256>}, {pipeline_mode = #tpu.pipeline_mode<synchronous>, transform_indices = @transform_3, window_bounds = array<i64: 128, 128>}, {pipeline_mode = #tpu.pipeline_mode<synchronous>, transform_indices = @transform_4, window_bounds = array<i64: 1, 128>}, {pipeline_mode = #tpu.pipeline_mode<synchronous>, transform_indices = @transform_5, window_bounds = array<i64: 1, 128>}, {transform_indices = @transform_6, window_bounds = array<i64: 8, 128>}]} {
    %c0 = arith.constant 0 : index
    %c0_0 = arith.constant 0 : index
    %0 = vector.load %arg1[%c0, %c0_0] : memref<8x32xf32, #tpu.memory_space<vmem>>, vector<8x32xf32>
    %c0_1 = arith.constant 0 : index
    %c0_2 = arith.constant 0 : index
    %1 = vector.load %arg2[%c0_1, %c0_2] : memref<32x256xf32, #tpu.memory_space<vmem>>, vector<32x256xf32>
    %cst = arith.constant dense<0.000000e+00> : vector<8x256xf32>
    %2 = tpu.matmul %0, %1, %cst {dimension_numbers = #tpu.dot_dimension_numbers<[1], [0], [0], [1], [0, 0, 1, 1], [], []>} : vector<8x32xf32>, vector<32x256xf32>, vector<8x256xf32> -> vector<8x256xf32>
    %c0_3 = arith.constant 0 : index
    %c0_4 = arith.constant 0 : index
    %3 = vector.load %arg3[%c0_3, %c0_4] : memref<1x256xf32, #tpu.memory_space<vmem>>, vector<1x256xf32>
    %4 = vector.broadcast %3 : vector<1x256xf32> to vector<8x256xf32>
    %5 = arith.addf %2, %4 : vector<8x256xf32>
    %cst_5 = arith.constant 0.000000e+00 : f32
    %6 = vector.broadcast %cst_5 : f32 to vector<8x256xf32>
    %7 = arith.maximumf %5, %6 : vector<8x256xf32>
    %8 = vector.extract_strided_slice %7 {offsets = [0, 0], sizes = [8, 128], strides = [1, 1]} : vector<8x256xf32> to vector<8x128xf32>
    %9 = vector.extract_strided_slice %7 {offsets = [0, 128], sizes = [8, 128], strides = [1, 1]} : vector<8x256xf32> to vector<8x128xf32>
    %c0_6 = arith.constant 0 : index
    %c0_7 = arith.constant 0 : index
    %10 = vector.load %arg4[%c0_6, %c0_7] : memref<128x128xf32, #tpu.memory_space<vmem>>, vector<128x128xf32>
    %cst_8 = arith.constant dense<0.000000e+00> : vector<8x128xf32>
    %11 = tpu.matmul %8, %10, %cst_8 {dimension_numbers = #tpu.dot_dimension_numbers<[1], [0], [0], [1], [0, 0, 1, 1], [], []>} : vector<8x128xf32>, vector<128x128xf32>, vector<8x128xf32> -> vector<8x128xf32>
    %c0_9 = arith.constant 0 : index
    %c0_10 = arith.constant 0 : index
    %12 = vector.load %arg5[%c0_9, %c0_10] : memref<1x128xf32, #tpu.memory_space<vmem>>, vector<1x128xf32>
    %13 = vector.broadcast %12 : vector<1x128xf32> to vector<8x128xf32>
    %14 = arith.addf %11, %13 : vector<8x128xf32>
    %c0_11 = arith.constant 0 : index
    %c0_12 = arith.constant 0 : index
    %15 = vector.load %arg6[%c0_11, %c0_12] : memref<1x128xf32, #tpu.memory_space<vmem>>, vector<1x128xf32>
    %16 = vector.broadcast %15 : vector<1x128xf32> to vector<8x128xf32>
    %17 = arith.mulf %9, %16 : vector<8x128xf32>
    %cst_13 = arith.constant dense<0.000000e+00> : vector<8xf32>
    %18 = vector.multi_reduction <add>, %17, %cst_13 [1] : vector<8x128xf32> to vector<8xf32>
    %19 = vector.shape_cast %18 : vector<8xf32> to vector<8x1xf32>
    %20 = tpu.iota {dimensions = array<i32: 1>} : vector<8x128xi32>
    %c8_i32 = arith.constant 8 : i32
    %21 = vector.broadcast %c8_i32 : i32 to vector<8x128xi32>
    %22 = arith.cmpi eq, %20, %21 : vector<8x128xi32>
    %23 = vector.broadcast %19 : vector<8x1xf32> to vector<8x128xf32>
    %24 = arith.addf %14, %23 : vector<8x128xf32>
    %25 = arith.select %22, %24, %14 : vector<8x128xi1>, vector<8x128xf32>
    %c0_14 = arith.constant 0 : index
    %c0_15 = arith.constant 0 : index
    %26 = vector.load %arg7[%c0_14, %c0_15] : memref<8x128xf32, #tpu.memory_space<vmem>>, vector<8x128xf32>
    tpu.vector_store %arg7[%c0_14, %c0_15], %25 {strides = array<i32>} : memref<8x128xf32, #tpu.memory_space<vmem>>, vector<8x128xf32>,
    return
  }
  func.func @transform_0(%arg0: i32) -> (i32, i32) {
    %c0_i32 = arith.constant 0 : i32
    %c0_i32_0 = arith.constant 0 : i32
    return %arg0, %c0_i32 : i32, i32
  }
  func.func @transform_1(%arg0: i32) -> (i32, i32) {
    %c0_i32 = arith.constant 0 : i32
    %c0_i32_0 = arith.constant 0 : i32
    %c0_i32_1 = arith.constant 0 : i32
    return %c0_i32, %c0_i32_0 : i32, i32
  }
  func.func @transform_2(%arg0: i32) -> (i32, i32) {
    %c0_i32 = arith.constant 0 : i32
    %c0_i32_0 = arith.constant 0 : i32
    %c0_i32_1 = arith.constant 0 : i32
    return %c0_i32, %c0_i32_0 : i32, i32
  }
  func.func @transform_3(%arg0: i32) -> (i32, i32) {
    %c0_i32 = arith.constant 0 : i32
    %c0_i32_0 = arith.constant 0 : i32
    %c0_i32_1 = arith.constant 0 : i32
    return %c0_i32, %c0_i32_0 : i32, i32
  }
  func.func @transform_4(%arg0: i32) -> (i32, i32) {
    %c0_i32 = arith.constant 0 : i32
    %c0_i32_0 = arith.constant 0 : i32
    %c0_i32_1 = arith.constant 0 : i32
    return %c0_i32, %c0_i32_0 : i32, i32
  }
  func.func @transform_5(%arg0: i32) -> (i32, i32) {
    %c0_i32 = arith.constant 0 : i32
    %c0_i32_0 = arith.constant 0 : i32
    %c0_i32_1 = arith.constant 0 : i32
    return %c0_i32, %c0_i32_0 : i32, i32
  }
  func.func @transform_6(%arg0: i32) -> (i32, i32) {
    %c0_i32 = arith.constant 0 : i32
    %c0_i32_0 = arith.constant 0 : i32
    return %arg0, %c0_i32 : i32, i32
  }
}

</mosaic_0001>

<llo_original>
// kernel: tpu_custom_call.1
$region0: #{tpu_custom_call.1}
  #allocation0 [shape = 'u32[]', space=smem, size = 0x4, offset = 0x4, fixed_abs, tag = 'smem constant byte address 0x4 - core index']
  #allocation1 [shape = 'u32[144,128]{1,0:T(1,128)}', space=vmem, size = 0x12000, scoped, tag = 'internal scratch']
  %s0 = inlined_call_operand.hbm [shape: f32[8,32], index: 0, kind: input, shape index: {}]
  %s1 = inlined_call_operand.hbm [shape: f32[32,256], index: 1, kind: input, shape index: {}]
  %s2 = inlined_call_operand.vmem [shape: f32[1,256], index: 2, kind: input, shape index: {}]
  %s3 = inlined_call_operand.hbm [shape: f32[128,128], index: 3, kind: input, shape index: {}]
  %s4 = inlined_call_operand.vmem [shape: f32[1,128], index: 4, kind: input, shape index: {}]
  %s5 = inlined_call_operand.vmem [shape: f32[1,128], index: 5, kind: input, shape index: {}]
  %s6 = inlined_call_operand.hbm [shape: f32[8,128], index: 6, kind: output, shape index: {}]
  %s7 = sld [smem:[#allocation0]]
  $region46: #{tpu_custom_call.1} parent=0
    _
  %s9 = ssub.s32 1, %s7
  %s10 = scalar_select 0, %s9, %s7
  $region1: #{tpu_custom_call.1} parent=0
    #allocation2 [shape = 'u8[4096]{0}', space=vmem, size = 0x1000, scoped, tag = 'input window, operand 0, single buffered']
    #allocation3 [shape = 's32[1]{0}', space=sflag, size = 0x4, scoped, tag = 'scoped memory for tpu_custom_call.1']
    #allocation4 [shape = 's32[1]{0}', space=sflag, size = 0x4, scoped, tag = 'scoped memory for tpu_custom_call.1']
    #allocation5 [shape = 'u8[32768]{0}', space=vmem, size = 0x8000, scoped, tag = 'input window, operand 1, single buffered']
    #allocation6 [shape = 's32[1]{0}', space=sflag, size = 0x4, scoped, tag = 'scoped memory for tpu_custom_call.1']
    #allocation7 [shape = 'u8[65536]{0}', space=vmem, size = 0x10000, scoped, tag = 'input window, operand 3, single buffered']
    #allocation8 [shape = 'u8[4096]{0}', space=vmem, size = 0x1000, scoped, tag = 'output window, operand 0, single buffered']
    %11 = vsyncpa [#allocation3], 0
    %12 = vsyncpa [#allocation6], 0
    %13 = vsyncpa [#allocation4], 0
    // Predicated region
    $region2: #{tpu_custom_call.1} parent=1 // pred_check
      _
    $region3: #{tpu_custom_call.1} parent=1 // pred_check_branch
      %15 = sbr.rel (0) target = $region5
    $region4: #{tpu_custom_call.1} parent=1 // pred_region
      %s17 = ssub.s32 128, 128
      %18 = vsyncadd [#allocation3], %s17
      %s20 = sshll.u32 [#allocation2], 4
      %s21 = int_to_ptr.vmem [resolvable:$true] %s20
      %23 = dma.hbm_to_vmem [thread:$0]  %s0, 128, %s21, [#allocation3]
    $region5: #{tpu_custom_call.1} parent=1 // pred_fallthru
      _
    // Predicated region
    $region6: #{tpu_custom_call.1} parent=1 // pred_check
      _
    $region7: #{tpu_custom_call.1} parent=1 // pred_check_branch
      %25 = sbr.rel (0) target = $region9
    $region8: #{tpu_custom_call.1} parent=1 // pred_region
      %s27 = ssub.s32 1024, 1024
      %28 = vsyncadd [#allocation6], %s27
      %s29 = sshll.u32 [#allocation5], 4
      %s30 = int_to_ptr.vmem [resolvable:$true] %s29
      %35 = dma.hbm_to_vmem [thread:$0]  %s1, 1024, %s30, [#allocation6], 256, 256, 16
    $region9: #{tpu_custom_call.1} parent=1 // pred_fallthru
      _
    // Predicated region
    $region10: #{tpu_custom_call.1} parent=1 // pred_check
      _
    $region11: #{tpu_custom_call.1} parent=1 // pred_check_branch
      %37 = sbr.rel (0) target = $region13
    $region12: #{tpu_custom_call.1} parent=1 // pred_region
      _
    $region13: #{tpu_custom_call.1} parent=1 // pred_fallthru
      _
    // Predicated region
    $region14: #{tpu_custom_call.1} parent=1 // pred_check
      _
    $region15: #{tpu_custom_call.1} parent=1 // pred_check_branch
      %39 = sbr.rel (0) target = $region17
    $region16: #{tpu_custom_call.1} parent=1 // pred_region
      %s41 = ssub.s32 2048, 2048
      %42 = vsyncadd [#allocation6], %s41
      %s43 = sshll.u32 [#allocation7], 4
      %s44 = int_to_ptr.vmem [resolvable:$true] %s43
      %49 = dma.hbm_to_vmem [thread:$0]  %s3, 2048, %s44, [#allocation6], 128, 128, 8
    $region17: #{tpu_custom_call.1} parent=1 // pred_fallthru
      _
    // Predicated region
    $region18: #{tpu_custom_call.1} parent=1 // pred_check
      _
    $region19: #{tpu_custom_call.1} parent=1 // pred_check_branch
      %51 = sbr.rel (0) target = $region21
    $region20: #{tpu_custom_call.1} parent=1 // pred_region
      _
    $region21: #{tpu_custom_call.1} parent=1 // pred_fallthru
      _
    // Predicated region
    $region22: #{tpu_custom_call.1} parent=1 // pred_check
      _
    $region23: #{tpu_custom_call.1} parent=1 // pred_check_branch
      %53 = sbr.rel (0) target = $region25
    $region24: #{tpu_custom_call.1} parent=1 // pred_region
      _
    $region25: #{tpu_custom_call.1} parent=1 // pred_fallthru
      _
    // Predicated region
    $region26: #{tpu_custom_call.1} parent=1 // pred_check
      _
    $region27: #{tpu_custom_call.1} parent=1 // pred_check_branch
      %55 = sbr.rel (0) target = $region29
    $region28: #{tpu_custom_call.1} parent=1 // pred_region
      %56 = dma.done [#allocation3], 128
    $region29: #{tpu_custom_call.1} parent=1 // pred_fallthru
      _
    // Predicated region
    $region30: #{tpu_custom_call.1} parent=1 // pred_check
      _
    $region31: #{tpu_custom_call.1} parent=1 // pred_check_branch
      %58 = sbr.rel (0) target = $region33
    $region32: #{tpu_custom_call.1} parent=1 // pred_region
      %59 = dma.done [#allocation6], 1024
    $region33: #{tpu_custom_call.1} parent=1 // pred_fallthru
      _
    // Predicated region
    $region34: #{tpu_custom_call.1} parent=1 // pred_check
      _
    $region35: #{tpu_custom_call.1} parent=1 // pred_check_branch
      %61 = sbr.rel (0) target = $region37
    $region36: #{tpu_custom_call.1} parent=1 // pred_region
      %62 = dma.done [#allocation6], 2048
    $region37: #{tpu_custom_call.1} parent=1 // pred_fallthru
      _
    %v63 = vld [vmem:[#allocation2] sm:$0xff]
    %v64 = vld [vmem:[#allocation5] sm:$0xff]
    %v65 = vld [vmem:[#allocation5 + $0x8] sm:$0xff]
    %v66 = vld [vmem:[#allocation5 + $0x10] sm:$0xff]
    %v67 = vld [vmem:[#allocation5 + $0x18] sm:$0xff]
    %v68 = vld [vmem:[#allocation5 + $0x20] sm:$0xff]
    %v69 = vld [vmem:[#allocation5 + $0x28] sm:$0xff]
    %v70 = vld [vmem:[#allocation5 + $0x30] sm:$0xff]
    %v71 = vld [vmem:[#allocation5 + $0x38] sm:$0xff]
    %v72 = vld [vmem:[%s2] sm:$0x3]
    %v74 = vlaneseq
    %v75 = vshrl.u32 %v74, 7
    %v76 = vsub.s32 0, %v75
    %v77 = vrot.slane %v72, %v76
    %v78 = vlaneseq
    %v79 = vshrl.u32 %v78, 7
    %v80 = vsub.s32 1, %v79
    %v81 = vrot.slane %v72, %v80
    %vm84 = vcmask 261120
    %v86 = vsel %vm84, %v63, 0
    %88 = vmatprep.subr.mxu0 %v65
    %89 = vmatpush1.msra.mxu0 %v64
    %90 = vmatprep.subr.mxu0 %v67
    %91 = vmatpush1.msra.mxu0 %v66
    %92 = vmatprep.subr.mxu0 %v69
    %93 = vmatpush1.msra.mxu0 %v68
    %94 = vmatprep.subr.mxu0 %v71
    %95 = vmatpush1.msra.mxu0 %v70
    %96 = vmatprep.subr.mxu0 0.0
    %97 = vmatpush1.msra.mxu0 0.0
    %98 = vmatprep.subr.mxu0 0.0
    %99 = vmatpush1.msra.mxu0 0.0
    %100 = vmatprep.subr.mxu0 0.0
    %101 = vmatpush1.msra.mxu0 0.0
    %102 = vmatprep.subr.mxu0 0.0
    %103 = vmatpush1.msra.mxu0 0.0
    %104 = vmatprep.subr.mxu0 0.0
    %105 = vmatpush1.msra.mxu0 0.0
    %106 = vmatprep.subr.mxu0 0.0
    %107 = vmatpush1.msra.mxu0 0.0
    %108 = vmatprep.subr.mxu0 0.0
    %109 = vmatpush1.msra.mxu0 0.0
    %110 = vmatprep.subr.mxu0 0.0
    %111 = vmatpush1.msra.mxu0 0.0
    %112 = vmatprep.subr.mxu0 0.0
    %113 = vmatpush1.msra.mxu0 0.0
    %114 = vmatprep.subr.mxu0 0.0
    %115 = vmatpush1.msra.mxu0 0.0
    %116 = vmatprep.subr.mxu0 0.0
    %117 = vmatpush1.msra.mxu0 0.0
    %118 = vmatprep.subr.mxu0 0.0
    %119 = vmatpush1.msra.mxu0 0.0
    %120 = vmatprep.subr.mxu0 0.0
    %121 = vmatpush1.msra.mxu0 0.0
    %122 = vmatprep.subr.mxu0 0.0
    %123 = vmatpush1.msra.mxu0 0.0
    %124 = vmatprep.subr.mxu0 0.0
    %125 = vmatpush1.msra.mxu0 0.0
    %126 = vmatprep.subr.mxu0 0.0
    %127 = vmatpush1.msra.mxu0 0.0
    %128 = vmatprep.subr.mxu0 0.0
    %129 = vmatpush1.msra.mxu0 0.0
    %130 = vmatprep.subr.mxu0 0.0
    %131 = vmatpush1.msra.mxu0 0.0
    %132 = vmatprep.subr.mxu0 0.0
    %133 = vmatpush1.msra.mxu0 0.0
    %134 = vmatprep.subr.mxu0 0.0
    %135 = vmatpush1.msra.mxu0 0.0
    %136 = vmatprep.subr.mxu0 0.0
    %137 = vmatpush1.msra.mxu0 0.0
    %138 = vmatprep.subr.mxu0 0.0
    %139 = vmatpush1.msra.mxu0 0.0
    %140 = vmatprep.subr.mxu0 0.0
    %141 = vmatpush1.msra.mxu0 0.0
    %142 = vmatprep.subr.mxu0 0.0
    %143 = vmatpush1.msra.mxu0 0.0
    %144 = vmatprep.subr.mxu0 0.0
    %145 = vmatpush1.msra.mxu0 0.0
    %146 = vmatprep.subr.mxu0 0.0
    %147 = vmatpush1.msra.mxu0 0.0
    %148 = vmatprep.subr.mxu0 0.0
    %149 = vmatpush1.msra.mxu0 0.0
    %150 = vmatprep.subr.mxu0 0.0
    %151 = vmatpush1.msra.mxu0 0.0
    %152 = vmatprep.mubr.f32.mxu0 0.0
    %153 = vmatmul.mubr.f32.gmra.mrb[0].mxu0 %v86
    %v154 = vpop.f32.mrb[0].mxu0
    %v155 = vadd.f32 %v77, %v154
    %v156 = vpop.f32.mrb[0].mxu0
    %v157 = vadd.f32 %v81, %v156
    %158 = vdwg.mxu0
    %v159 = vmax.f32 %v155, 0.0
    %v160 = vmax.f32 %v157, 0.0
    %v161 = vld [vmem:[#allocation7] sm:$0xff]
    %v162 = vld [vmem:[#allocation7 + $0x8] sm:$0xff]
    %v163 = vld [vmem:[#allocation7 + $0x10] sm:$0xff]
    %v164 = vld [vmem:[#allocation7 + $0x18] sm:$0xff]
    %v165 = vld [vmem:[#allocation7 + $0x20] sm:$0xff]
    %v166 = vld [vmem:[#allocation7 + $0x28] sm:$0xff]
    %v167 = vld [vmem:[#allocation7 + $0x30] sm:$0xff]
    %v168 = vld [vmem:[#allocation7 + $0x38] sm:$0xff]
    %v169 = vld [vmem:[#allocation7 + $0x40] sm:$0xff]
    %v170 = vld [vmem:[#allocation7 + $0x48] sm:$0xff]
    %v171 = vld [vmem:[#allocation7 + $0x50] sm:$0xff]
    %v172 = vld [vmem:[#allocation7 + $0x58] sm:$0xff]
    %v173 = vld [vmem:[#allocation7 + $0x60] sm:$0xff]
    %v174 = vld [vmem:[#allocation7 + $0x68] sm:$0xff]
    %v175 = vld [vmem:[#allocation7 + $0x70] sm:$0xff]
    %v176 = vld [vmem:[#allocation7 + $0x78] sm:$0xff]
    %v177 = vld [vmem:[%s4] sm:$0x1]
    %v179 = vlaneseq
    %v180 = vshrl.u32 %v179, 7
    %v181 = vsub.s32 0, %v180
    %v182 = vrot.slane %v177, %v181
    %184 = vmatprep.subr.mxu0 0.0
    %185 = vmatpush1.msra.mxu0 %v161
    %186 = vmatprep.subr.mxu0 0.0
    %187 = vmatpush1.msra.mxu0 %v162
    %188 = vmatprep.subr.mxu0 0.0
    %189 = vmatpush1.msra.mxu0 %v163
    %190 = vmatprep.subr.mxu0 0.0
    %191 = vmatpush1.msra.mxu0 %v164
    %192 = vmatprep.subr.mxu0 0.0
    %193 = vmatpush1.msra.mxu0 %v165
    %194 = vmatprep.subr.mxu0 0.0
    %195 = vmatpush1.msra.mxu0 %v166
    %196 = vmatprep.subr.mxu0 0.0
    %197 = vmatpush1.msra.mxu0 %v167
    %198 = vmatprep.subr.mxu0 0.0
    %199 = vmatpush1.msra.mxu0 %v168
    %200 = vmatprep.subr.mxu0 0.0
    %201 = vmatpush1.msra.mxu0 %v169
    %202 = vmatprep.subr.mxu0 0.0
    %203 = vmatpush1.msra.mxu0 %v170
    %204 = vmatprep.subr.mxu0 0.0
    %205 = vmatpush1.msra.mxu0 %v171
    %206 = vmatprep.subr.mxu0 0.0
    %207 = vmatpush1.msra.mxu0 %v172
    %208 = vmatprep.subr.mxu0 0.0
    %209 = vmatpush1.msra.mxu0 %v173
    %210 = vmatprep.subr.mxu0 0.0
    %211 = vmatpush1.msra.mxu0 %v174
    %212 = vmatprep.subr.mxu0 0.0
    %213 = vmatpush1.msra.mxu0 %v175
    %214 = vmatprep.subr.mxu0 0.0
    %215 = vmatpush1.msra.mxu0 %v176
    %216 = vmatprep.subr.mxu0 0.0
    %217 = vmatpush1.msra.mxu0 0.0
    %218 = vmatprep.subr.mxu0 0.0
    %219 = vmatpush1.msra.mxu0 0.0
    %220 = vmatprep.subr.mxu0 0.0
    %221 = vmatpush1.msra.mxu0 0.0
    %222 = vmatprep.subr.mxu0 0.0
    %223 = vmatpush1.msra.mxu0 0.0
    %224 = vmatprep.subr.mxu0 0.0
    %225 = vmatpush1.msra.mxu0 0.0
    %226 = vmatprep.subr.mxu0 0.0
    %227 = vmatpush1.msra.mxu0 0.0
    %228 = vmatprep.subr.mxu0 0.0
    %229 = vmatpush1.msra.mxu0 0.0
    %230 = vmatprep.subr.mxu0 0.0
    %231 = vmatpush1.msra.mxu0 0.0
    %232 = vmatprep.subr.mxu0 0.0
    %233 = vmatpush1.msra.mxu0 0.0
    %234 = vmatprep.subr.mxu0 0.0
    %235 = vmatpush1.msra.mxu0 0.0
    %236 = vmatprep.subr.mxu0 0.0
    %237 = vmatpush1.msra.mxu0 0.0
    %238 = vmatprep.subr.mxu0 0.0
    %239 = vmatpush1.msra.mxu0 0.0
    %240 = vmatprep.subr.mxu0 0.0
    %241 = vmatpush1.msra.mxu0 0.0
    %242 = vmatprep.subr.mxu0 0.0
    %243 = vmatpush1.msra.mxu0 0.0
    %244 = vmatprep.subr.mxu0 0.0
    %245 = vmatpush1.msra.mxu0 0.0
    %246 = vmatprep.subr.mxu0 0.0
    %247 = vmatpush1.msra.mxu0 0.0
    %248 = vmatprep.mubr.f32.mxu0 0.0
    %249 = vmatmul.mubr.f32.gmra.mrb[0].mxu0 %v159
    %v250 = vpop.f32.mrb[0].mxu0
    %v251 = vadd.f32 %v182, %v250
    %v252 = vpop.f32.mrb[0].mxu0
    %253 = vdwg.mxu0
    %v254 = vld [vmem:[%s5] sm:$0x1]
    %v256 = vlaneseq
    %v257 = vshrl.u32 %v256, 7
    %v258 = vsub.s32 0, %v257
    %v259 = vrot.slane %v254, %v258
    %v261 = vmul.f32 %v160, %v259
    %262 = vadd.xlane.f32.xlu0 %v261
    %v263 = vpop.xlane.xlu0 %262
    %v264 = vlaneseq
    %v265 = vand.u32 %v264, 127
    %vm266 = vcmp.eq.s32.totalorder %v265, 8
    %v267 = vadd.f32 %v251, %v263
    %v268 = vsel %vm266, %v267, %v251
    %269 = vst [vmem:[#allocation8] sm:$0xff] %v268
    // Predicated region
    $region38: #{tpu_custom_call.1} parent=1 // pred_check
      _
    $region39: #{tpu_custom_call.1} parent=1 // pred_check_branch
      %271 = sbr.rel (0) target = $region41
    $region40: #{tpu_custom_call.1} parent=1 // pred_region
      %s273 = ssub.s32 128, 128
      %274 = vsyncadd [#allocation4], %s273
      %s276 = sshll.u32 [#allocation8], 4
      %s277 = int_to_ptr.vmem [resolvable:$true] %s276
      %279 = dma.vmem_to_hbm [thread:$0]  %s277, 128, %s6, [#allocation4]
    $region41: #{tpu_custom_call.1} parent=1 // pred_fallthru
      _
    // Predicated region
    $region42: #{tpu_custom_call.1} parent=1 // pred_check
      _
    $region43: #{tpu_custom_call.1} parent=1 // pred_check_branch
      %281 = sbr.rel (0) target = $region45
    $region44: #{tpu_custom_call.1} parent=1 // pred_region
      %282 = dma.done [#allocation4], 128
    $region45: #{tpu_custom_call.1} parent=1 // pred_fallthru
      _
    %283 = vsyncpa [#allocation3], 1
    %284 = vsyncpa [#allocation6], 1
    %285 = vsyncpa [#allocation4], 1

</llo_original>
